<compile_context>
chip_gen: v5e
topology: v5e:2x2
jax: 0.10.0
libtpu: 0.0.40
codegen_flags: <defaults>
</compile_context>

<pallas_src>
import jax
import jax.numpy as jnp
from jax.experimental import pallas as pl
from jax.experimental.pallas import tpu as pltpu


def rf_vel_kernel(xT_ref, velT_ref, invc_ref, vscale_ref,
                  sdiffT_ref, srow_ref, eaproj_ref,
                  w1r_ref, b1_ref, w2_ref,
                  out_ref, x_sc, agg_sc):
    """One grid step = (layer l, edge-tile e).

    x is carried across grid steps in VMEM scratch; agg accumulates the per-node
    segment sum over edge tiles and is folded into x at the last tile of each layer.
    """
    l = pl.program_id(0)
    e = pl.program_id(1)
    n_et = pl.num_programs(1)

    @pl.when((l == 0) & (e == 0))
    def _init_x():
        x_sc[...] = xT_ref[...]                                   # (3, Np) f32

    @pl.when(e == 0)
    def _init_agg():
        agg_sc[...] = jnp.zeros_like(agg_sc)

    x = x_sc[...]                                                 # (3, Np) f32
    npad = x.shape[1]

    # --- gather x[row]-x[col] = x @ (1_row - 1_col)^T as a native bf16 MXU matmul.
    # hi/lo split keeps ~f32 accuracy: incidence entries are exactly {-1,0,1} and the
    # accumulation is f32, so the only error is representing x_lo in bf16 (~2^-18 rel).
    x_hi = x.astype(jnp.bfloat16).astype(jnp.float32)
    x_lo = x - x_hi
    lhs = jnp.concatenate(
        [x_hi, x_lo, jnp.zeros((2, npad), jnp.float32)], axis=0).astype(jnp.bfloat16)
    d = jnp.dot(lhs, sdiffT_ref[...], preferred_element_type=jnp.float32)   # (8, TE)
    x_diff = d[0:3, :] + d[3:6, :]                                          # (3, TE)

    # radial without a cross-lane reduce: explicit coordinate rows (VPU only)
    d0 = x_diff[0:1, :]
    d1 = x_diff[1:2, :]
    d2 = x_diff[2:3, :]
    radial = jnp.sqrt(d0 * d0 + d1 * d1 + d2 * d2)                          # (1, TE)

    # edge MLP phi: Linear(1+EA, nf) -> SiLU -> Linear(nf, 1, no bias) -> tanh
    # (edge_attr projection hoisted to the wrapper; streamed here in bf16, promoted in-add)
    h = w1r_ref[0] * radial + eaproj_ref[0] + b1_ref[0]                     # (nf, TE)
    h = h * pl.reciprocal(1.0 + jnp.exp(-h), approx=True)                   # SiLU (EUP recip)
    e_gate = jnp.tanh(jnp.sum(h * w2_ref[0], axis=0, keepdims=True))        # (1, TE)
    m = x_diff * e_gate                                                     # (3, TE)

    # --- scatter(sum) over `row`: m @ 1_row, same bf16 hi/lo split, f32 accumulation
    te = m.shape[1]
    m_hi = m.astype(jnp.bfloat16).astype(jnp.float32)
    m_lo = m - m_hi
    mlhs = jnp.concatenate(
        [m_hi, m_lo, jnp.zeros((2, te), jnp.float32)], axis=0).astype(jnp.bfloat16)
    s = jnp.dot(mlhs, srow_ref[...], preferred_element_type=jnp.float32)    # (8, Np)
    agg_sc[...] += s[0:3, :] + s[3:6, :]

    @pl.when(e == n_et - 1)
    def _finish_layer():
        x_new = x_sc[...] + agg_sc[...] * invc_ref[...]   # segment mean, coords_weight=1
        x_new = x_new + velT_ref[...] * vscale_ref[0]     # x += vel * coord_mlp_vel(vel_norm)
        x_sc[...] = x_new
        out_ref[...] = x_new                              # single lane-dense store per layer


def _round_up(v, m):
    return ((v + m - 1) // m) * m


def rf_vel_forward(vel_norm, x, edges, vel, edge_attr, params, n_layers):
    row, col = edges
    N = int(x.shape[0])
    E = int(row.shape[0])
    nf = int(params['phi_w1r'].shape[-1])
    f32, bf16 = jnp.float32, jnp.bfloat16

    # lane-dense padded axes: unmasked vld/vst, 16-aligned bf16 sublanes
    Np = _round_up(N, 128)
    Ep0 = _round_up(E, 128)

    # ---------------- generation-aware VMEM budget / edge-tile size ----------------
    try:
        vmem_cap = int(pltpu.get_tpu_info().vmem_capacity_bytes)   # 128 MiB v5e/v6e, 64 MiB v7x
    except Exception:
        vmem_cap = 64 << 20                                        # conservative fallback
    budget = vmem_cap // 2

    # bytes per edge column: 2x-buffered bf16 incidence + ea_proj tiles plus f32 temps
    per_te = 8 * Np + 16 * nf + 160
    resident = 200 * Np + 12 * n_layers * nf + (1 << 20)
    te_max = ((budget - resident) // per_te) // 128 * 128
    TE = int(max(128, min(te_max, Ep0)))
    Ep = _round_up(E, TE)
    n_et = Ep // TE
    # When TE == Ep (incidence fits VMEM) the incidence index maps are constant, so
    # Pallas DMAs the layer-invariant incidence from HBM exactly once for all layers.

    # ---------------- layer-invariant precompute (hoisted out of the kernel) ----------------
    oh_row = jax.nn.one_hot(row, Np, dtype=f32)                     # (E, Np)
    oh_col = jax.nn.one_hot(col, Np, dtype=f32)                     # (E, Np)
    # incidence entries are exactly {-1,0,1}: bf16 is exact, halves HBM/VMEM bytes
    sdiffT = jnp.pad((oh_row - oh_col).T, ((0, 0), (0, Ep - E))).astype(bf16)   # (Np, Ep)
    srow = jnp.pad(oh_row, ((0, Ep - E), (0, 0))).astype(bf16)                  # (Ep, Np)
    counts = jnp.sum(oh_row, axis=0)                                # (Np,)
    inv_cnt = (1.0 / jnp.maximum(counts, 1.0))[None, :]             # (1, Np)

    # edge_attr projection for all layers at once, streamed in bf16: (L, nf, Ep)
    ea_proj = jnp.einsum('lan,ea->lne', params['phi_w1e'], edge_attr)
    ea_proj = jnp.pad(ea_proj, ((0, 0), (0, 0), (0, Ep - E))).astype(bf16)

    # velocity-gate scale table (depends only on vel_norm): (L, 1, Np)
    vn = vel_norm[:, 0]                                             # (N,)
    hv = jax.nn.silu(params['vel_w1'][:, 0, :, None] * vn[None, None, :]
                     + params['vel_b1'][:, 0, :, None])             # (L, nf, N)
    vscale = (jnp.sum(hv * params['vel_w2'][:, 0, :, None], axis=1, keepdims=True)
              + params['vel_b2'])                                   # (L, 1, N)
    vscale = jnp.pad(vscale, ((0, 0), (0, 0), (0, Np - N))).astype(f32)

    # per-layer phi weights in transposed (feature-on-sublane) layout
    w1r = jnp.swapaxes(params['phi_w1r'], 1, 2).astype(f32)         # (L, nf, 1)
    b1 = jnp.swapaxes(params['phi_b1'], 1, 2).astype(f32)           # (L, nf, 1)
    w2 = jnp.swapaxes(params['phi_w2'], 1, 2).astype(f32)           # (L, nf, 1)

    xT = jnp.pad(x.T.astype(f32), ((0, 0), (0, Np - N)))            # (3, Np)
    velT = jnp.pad(vel.T.astype(f32), ((0, 0), (0, Np - N)))        # (3, Np)

    need = resident + per_te * TE
    vmem_limit = int(min(int(0.85 * vmem_cap), max(16 << 20, 2 * need)))

    grid_spec = pltpu.PrefetchScalarGridSpec(
        num_scalar_prefetch=0,
        grid=(n_layers, n_et),
        in_specs=[
            pl.BlockSpec((3, Np), lambda l, e: (0, 0)),             # xT (resident)
            pl.BlockSpec((3, Np), lambda l, e: (0, 0)),             # velT (resident)
            pl.BlockSpec((1, Np), lambda l, e: (0, 0)),             # inv_cnt (resident)
            pl.BlockSpec((1, 1, Np), lambda l, e: (l, 0, 0)),       # vscale, per layer
            pl.BlockSpec((Np, TE), lambda l, e: (0, e)),            # sdiffT (fetched once if n_et==1)
            pl.BlockSpec((TE, Np), lambda l, e: (e, 0)),            # srow   (fetched once if n_et==1)
            pl.BlockSpec((1, nf, TE), lambda l, e: (l, 0, e)),      # ea_proj (bf16, per layer)
            pl.BlockSpec((1, nf, 1), lambda l, e: (l, 0, 0)),       # phi W1 radial column
            pl.BlockSpec((1, nf, 1), lambda l, e: (l, 0, 0)),       # phi b1
            pl.BlockSpec((1, nf, 1), lambda l, e: (l, 0, 0)),       # phi W2
        ],
        out_specs=pl.BlockSpec((3, Np), lambda l, e: (0, 0)),
        scratch_shapes=[pltpu.VMEM((3, Np), f32),                   # running x
                        pltpu.VMEM((3, Np), f32)],                  # segment-sum accumulator
    )

    outT = pl.pallas_call(
        rf_vel_kernel,
        out_shape=jax.ShapeDtypeStruct((3, Np), f32),
        grid_spec=grid_spec,
        compiler_params=pltpu.CompilerParams(
            # both axes carry a serial dependency (x across layers, agg across edge tiles)
            dimension_semantics=("arbitrary", "arbitrary"),
            vmem_limit_bytes=vmem_limit,
        ),
    )(xT, velT, inv_cnt, vscale, sdiffT, srow, ea_proj, w1r, b1, w2)
    return outT[:, :N].T


def init_params(key, hidden_nf, edge_attr_nf, n_layers):
    ks = jax.random.split(key, 8)
    s = 0.2
    return {
        # Linear(1+EA, nf): radial column and edge_attr columns split apart
        'phi_w1r': s * jax.random.normal(ks[0], (n_layers, 1, hidden_nf), jnp.float32),
        'phi_w1e': s * jax.random.normal(ks[1], (n_layers, edge_attr_nf, hidden_nf), jnp.float32),
        'phi_b1':  s * jax.random.normal(ks[2], (n_layers, 1, hidden_nf), jnp.float32),
        # Linear(nf, 1, bias=False), xavier gain=0.001 -> tiny init
        'phi_w2':  0.001 * jax.random.normal(ks[3], (n_layers, 1, hidden_nf), jnp.float32),
        # coord_mlp_vel: Linear(1, nf) -> SiLU -> Linear(nf, 1)
        'vel_w1':  s * jax.random.normal(ks[4], (n_layers, 1, hidden_nf), jnp.float32),
        'vel_b1':  s * jax.random.normal(ks[5], (n_layers, 1, hidden_nf), jnp.float32),
        'vel_w2':  s * jax.random.normal(ks[6], (n_layers, 1, hidden_nf), jnp.float32),
        'vel_b2':  s * jax.random.normal(ks[7], (n_layers, 1, 1), jnp.float32),
    }


def rf_vel_reference(vel_norm, x, edges, vel, edge_attr, params, n_layers):
    """Pure-JAX reference mirroring the PyTorch GCL_rf_vel stack."""
    row, col = edges
    N = x.shape[0]
    for i in range(n_layers):
        x_diff = x[row] - x[col]
        radial = jnp.sqrt(jnp.sum(x_diff ** 2, axis=1, keepdims=True))
        h = (radial * params['phi_w1r'][i]
             + edge_attr @ params['phi_w1e'][i]
             + params['phi_b1'][i])
        h = jax.nn.silu(h)
        e_out = jnp.tanh(jnp.sum(h * params['phi_w2'][i], axis=1, keepdims=True))
        m_ij = x_diff * e_out
        seg_sum = jnp.zeros((N, 3), x.dtype).at[row].add(m_ij)
        cnt = jnp.zeros((N, 3), x.dtype).at[row].add(jnp.ones_like(m_ij))
        x = x + seg_sum / jnp.maximum(cnt, 1.0)
        hv = jax.nn.silu(vel_norm * params['vel_w1'][i] + params['vel_b1'][i])
        vscale = jnp.sum(hv * params['vel_w2'][i], axis=1, keepdims=True) + params['vel_b2'][i]
        x = x + vel * vscale
    return x


if __name__ == "__main__":
    N, hidden_nf, edge_attr_nf, n_layers = 8, 32, 2, 4

    # fully-connected directed edges (no self loops), as in the N-body experiments
    rows, cols = [], []
    for i in range(N):
        for j in range(N):
            if i != j:
                rows.append(i)
                cols.append(j)
    row = jnp.array(rows, dtype=jnp.int32)
    col = jnp.array(cols, dtype=jnp.int32)
    E = int(row.shape[0])

    key = jax.random.PRNGKey(0)
    kx, kv, ke, kp = jax.random.split(key, 4)
    x = jax.random.normal(kx, (N, 3), jnp.float32)
    vel = jax.random.normal(kv, (N, 3), jnp.float32)
    vel_norm = jnp.sqrt(jnp.sum(vel * vel, axis=1, keepdims=True))
    edge_attr = jax.random.normal(ke, (E, edge_attr_nf), jnp.float32)

    params = init_params(kp, hidden_nf, edge_attr_nf, n_layers)

    out = rf_vel_forward(vel_norm, x, (row, col), vel, edge_attr, params, n_layers)
    out = jax.block_until_ready(out)

    ref = rf_vel_reference(vel_norm, x, (row, col), vel, edge_attr, params, n_layers)
    assert out.shape == (N, 3)
    assert jnp.allclose(out, ref, atol=1e-3, rtol=1e-3), (out, ref)

    print("KERNEL_OK")
</pallas_src>

<mosaic_0001>
module attributes {stable_mosaic.version = 11 : i64} {
  func.func @rf_vel_kernel(%arg0: i32, %arg1: i32, %arg2: memref<3x128xf32, #tpu.memory_space<vmem>>, %arg3: memref<3x128xf32, #tpu.memory_space<vmem>>, %arg4: memref<1x128xf32, #tpu.memory_space<vmem>>, %arg5: memref<1x1x128xf32, #tpu.memory_space<vmem>>, %arg6: memref<128x128xbf16, #tpu.memory_space<vmem>>, %arg7: memref<128x128xbf16, #tpu.memory_space<vmem>>, %arg8: memref<1x32x128xbf16, #tpu.memory_space<vmem>>, %arg9: memref<1x32x1xf32, #tpu.memory_space<vmem>>, %arg10: memref<1x32x1xf32, #tpu.memory_space<vmem>>, %arg11: memref<1x32x1xf32, #tpu.memory_space<vmem>>, %arg12: memref<3x128xf32, #tpu.memory_space<vmem>>, %arg13: memref<3x128xf32, #tpu.memory_space<vmem>>, %arg14: memref<3x128xf32, #tpu.memory_space<vmem>>) attributes {dimension_semantics = [#tpu.dimension_semantics<arbitrary>, #tpu.dimension_semantics<arbitrary>], iteration_bounds = array<i64: 4, 1>, scalar_prefetch = 0 : i64, scratch_operands = 2 : i64, tpu.core_type = #tpu.core_type<tc>, window_params = [{pipeline_mode = #tpu.pipeline_mode<synchronous>, transform_indices = @transform_0, window_bounds = array<i64: 3, 128>}, {pipeline_mode = #tpu.pipeline_mode<synchronous>, transform_indices = @transform_1, window_bounds = array<i64: 3, 128>}, {pipeline_mode = #tpu.pipeline_mode<synchronous>, transform_indices = @transform_2, window_bounds = array<i64: 1, 128>}, {transform_indices = @transform_3, window_bounds = array<i64: 1, 1, 128>}, {transform_indices = @transform_4, window_bounds = array<i64: 128, 128>}, {transform_indices = @transform_5, window_bounds = array<i64: 128, 128>}, {transform_indices = @transform_6, window_bounds = array<i64: 1, 32, 128>}, {transform_indices = @transform_7, window_bounds = array<i64: 1, 32, 1>}, {transform_indices = @transform_8, window_bounds = array<i64: 1, 32, 1>}, {transform_indices = @transform_9, window_bounds = array<i64: 1, 32, 1>}, {pipeline_mode = #tpu.pipeline_mode<synchronous>, transform_indices = @transform_10, window_bounds = array<i64: 3, 128>}]} {
    %c0_i32 = arith.constant 0 : i32
    %0 = arith.cmpi eq, %arg0, %c0_i32 : i32
    %c0_i32_0 = arith.constant 0 : i32
    %1 = arith.cmpi eq, %arg1, %c0_i32_0 : i32
    %2 = arith.andi %0, %1 : i1
    %3 = arith.extui %2 : i1 to i32
    %c0_i32_1 = arith.constant 0 : i32
    %4 = arith.cmpi ne, %3, %c0_i32_1 : i32
    scf.if %4 {
      %c0_33 = arith.constant 0 : index
      %c0_34 = arith.constant 0 : index
      %75 = vector.load %arg2[%c0_33, %c0_34] : memref<3x128xf32, #tpu.memory_space<vmem>>, vector<3x128xf32>
      %c0_35 = arith.constant 0 : index
      %c0_36 = arith.constant 0 : index
      %76 = vector.load %arg13[%c0_35, %c0_36] : memref<3x128xf32, #tpu.memory_space<vmem>>, vector<3x128xf32>
      tpu.vector_store %arg13[%c0_35, %c0_36], %75 {strides = array<i32>} : memref<3x128xf32, #tpu.memory_space<vmem>>, vector<3x128xf32>,
    } else {
    }
    %c0_i32_2 = arith.constant 0 : i32
    %5 = arith.cmpi eq, %arg1, %c0_i32_2 : i32
    %6 = arith.extui %5 : i1 to i32
    %c0_i32_3 = arith.constant 0 : i32
    %7 = arith.cmpi ne, %6, %c0_i32_3 : i32
    scf.if %7 {
      %cst_33 = arith.constant 0.000000e+00 : f32
      %75 = vector.broadcast %cst_33 : f32 to vector<3x128xf32>
      %c0_34 = arith.constant 0 : index
      %c0_35 = arith.constant 0 : index
      %76 = vector.load %arg14[%c0_34, %c0_35] : memref<3x128xf32, #tpu.memory_space<vmem>>, vector<3x128xf32>
      tpu.vector_store %arg14[%c0_34, %c0_35], %75 {strides = array<i32>} : memref<3x128xf32, #tpu.memory_space<vmem>>, vector<3x128xf32>,
    } else {
    }
    %c0 = arith.constant 0 : index
    %c0_4 = arith.constant 0 : index
    %8 = vector.load %arg13[%c0, %c0_4] : memref<3x128xf32, #tpu.memory_space<vmem>>, vector<3x128xf32>
    %9 = arith.truncf %8 : vector<3x128xf32> to vector<3x128xbf16>
    %10 = arith.extf %9 : vector<3x128xbf16> to vector<3x128xf32>
    %11 = arith.subf %8, %10 : vector<3x128xf32>
    %cst = arith.constant 0.000000e+00 : f32
    %12 = vector.broadcast %cst : f32 to vector<2x128xf32>
    %13 = tpu.concatenate %10, %11, %12 in 0 : vector<3x128xf32>, vector<3x128xf32>, vector<2x128xf32> -> vector<8x128xf32>
    %14 = arith.truncf %13 : vector<8x128xf32> to vector<8x128xbf16>
    %c0_5 = arith.constant 0 : index
    %c0_6 = arith.constant 0 : index
    %15 = vector.load %arg6[%c0_5, %c0_6] : memref<128x128xbf16, #tpu.memory_space<vmem>>, vector<128x128xbf16>
    %cst_7 = arith.constant dense<0.000000e+00> : vector<8x128xf32>
    %16 = tpu.matmul %14, %15, %cst_7 {dimension_numbers = #tpu.dot_dimension_numbers<[1], [0], [0], [1], [0, 0, 1, 1], [], []>} : vector<8x128xbf16>, vector<128x128xbf16>, vector<8x128xf32> -> vector<8x128xf32>
    %17 = vector.extract_strided_slice %16 {offsets = [0, 0], sizes = [3, 128], strides = [1, 1]} : vector<8x128xf32> to vector<3x128xf32>
    %18 = vector.extract_strided_slice %16 {offsets = [3, 0], sizes = [3, 128], strides = [1, 1]} : vector<8x128xf32> to vector<3x128xf32>
    %19 = arith.addf %17, %18 : vector<3x128xf32>
    %20 = vector.extract_strided_slice %19 {offsets = [0, 0], sizes = [1, 128], strides = [1, 1]} : vector<3x128xf32> to vector<1x128xf32>
    %21 = vector.extract_strided_slice %19 {offsets = [1, 0], sizes = [1, 128], strides = [1, 1]} : vector<3x128xf32> to vector<1x128xf32>
    %22 = vector.extract_strided_slice %19 {offsets = [2, 0], sizes = [1, 128], strides = [1, 1]} : vector<3x128xf32> to vector<1x128xf32>
    %23 = arith.mulf %20, %20 : vector<1x128xf32>
    %24 = arith.mulf %21, %21 : vector<1x128xf32>
    %25 = arith.addf %23, %24 : vector<1x128xf32>
    %26 = arith.mulf %22, %22 : vector<1x128xf32>
    %27 = arith.addf %25, %26 : vector<1x128xf32>
    %28 = math.sqrt %27 : vector<1x128xf32>
    %c0_8 = arith.constant 0 : index
    %c0_9 = arith.constant 0 : index
    %c0_10 = arith.constant 0 : index
    %29 = vector.load %arg9[%c0_8, %c0_9, %c0_10] : memref<1x32x1xf32, #tpu.memory_space<vmem>>, vector<1x32x1xf32>
    %30 = vector.shape_cast %29 : vector<1x32x1xf32> to vector<32x1xf32>
    %31 = vector.broadcast %30 : vector<32x1xf32> to vector<32x128xf32>
    %32 = vector.broadcast %28 : vector<1x128xf32> to vector<32x128xf32>
    %33 = arith.mulf %31, %32 : vector<32x128xf32>
    %c0_11 = arith.constant 0 : index
    %c0_12 = arith.constant 0 : index
    %c0_13 = arith.constant 0 : index
    %34 = vector.load %arg8[%c0_11, %c0_12, %c0_13] : memref<1x32x128xbf16, #tpu.memory_space<vmem>>, vector<1x32x128xbf16>
    %35 = vector.shape_cast %34 : vector<1x32x128xbf16> to vector<32x128xbf16>
    %36 = arith.extf %35 : vector<32x128xbf16> to vector<32x128xf32>
    %37 = arith.addf %33, %36 : vector<32x128xf32>
    %c0_14 = arith.constant 0 : index
    %c0_15 = arith.constant 0 : index
    %c0_16 = arith.constant 0 : index
    %38 = vector.load %arg10[%c0_14, %c0_15, %c0_16] : memref<1x32x1xf32, #tpu.memory_space<vmem>>, vector<1x32x1xf32>
    %39 = vector.shape_cast %38 : vector<1x32x1xf32> to vector<32x1xf32>
    %40 = vector.broadcast %39 : vector<32x1xf32> to vector<32x128xf32>
    %41 = arith.addf %37, %40 : vector<32x128xf32>
    %cst_17 = arith.constant 0.000000e+00 : f32
    %42 = vector.broadcast %cst_17 : f32 to vector<32x128xf32>
    %43 = arith.subf %42, %41 : vector<32x128xf32>
    %44 = math.exp %43 : vector<32x128xf32>
    %cst_18 = arith.constant 1.000000e+00 : f32
    %45 = vector.broadcast %cst_18 : f32 to vector<32x128xf32>
    %46 = arith.addf %45, %44 : vector<32x128xf32>
    %47 = tpu.reciprocal %46 {approx = true} : vector<32x128xf32> -> vector<32x128xf32>
    %48 = arith.mulf %41, %47 : vector<32x128xf32>
    %c0_19 = arith.constant 0 : index
    %c0_20 = arith.constant 0 : index
    %c0_21 = arith.constant 0 : index
    %49 = vector.load %arg11[%c0_19, %c0_20, %c0_21] : memref<1x32x1xf32, #tpu.memory_space<vmem>>, vector<1x32x1xf32>
    %50 = vector.shape_cast %49 : vector<1x32x1xf32> to vector<32x1xf32>
    %51 = vector.broadcast %50 : vector<32x1xf32> to vector<32x128xf32>
    %52 = arith.mulf %48, %51 : vector<32x128xf32>
    %cst_22 = arith.constant dense<0.000000e+00> : vector<128xf32>
    %53 = vector.multi_reduction <add>, %52, %cst_22 [0] : vector<32x128xf32> to vector<128xf32>
    %54 = vector.shape_cast %53 : vector<128xf32> to vector<1x128xf32>
    %55 = math.tanh %54 : vector<1x128xf32>
    %56 = vector.broadcast %55 : vector<1x128xf32> to vector<3x128xf32>
    %57 = arith.mulf %19, %56 : vector<3x128xf32>
    %58 = arith.truncf %57 : vector<3x128xf32> to vector<3x128xbf16>
    %59 = arith.extf %58 : vector<3x128xbf16> to vector<3x128xf32>
    %60 = arith.subf %57, %59 : vector<3x128xf32>
    %cst_23 = arith.constant 0.000000e+00 : f32
    %61 = vector.broadcast %cst_23 : f32 to vector<2x128xf32>
    %62 = tpu.concatenate %59, %60, %61 in 0 : vector<3x128xf32>, vector<3x128xf32>, vector<2x128xf32> -> vector<8x128xf32>
    %63 = arith.truncf %62 : vector<8x128xf32> to vector<8x128xbf16>
    %c0_24 = arith.constant 0 : index
    %c0_25 = arith.constant 0 : index
    %64 = vector.load %arg7[%c0_24, %c0_25] : memref<128x128xbf16, #tpu.memory_space<vmem>>, vector<128x128xbf16>
    %cst_26 = arith.constant dense<0.000000e+00> : vector<8x128xf32>
    %65 = tpu.matmul %63, %64, %cst_26 {dimension_numbers = #tpu.dot_dimension_numbers<[1], [0], [0], [1], [0, 0, 1, 1], [], []>} : vector<8x128xbf16>, vector<128x128xbf16>, vector<8x128xf32> -> vector<8x128xf32>
    %c0_27 = arith.constant 0 : index
    %c0_28 = arith.constant 0 : index
    %66 = vector.load %arg14[%c0_27, %c0_28] : memref<3x128xf32, #tpu.memory_space<vmem>>, vector<3x128xf32>
    %67 = vector.extract_strided_slice %65 {offsets = [0, 0], sizes = [3, 128], strides = [1, 1]} : vector<8x128xf32> to vector<3x128xf32>
    %68 = vector.extract_strided_slice %65 {offsets = [3, 0], sizes = [3, 128], strides = [1, 1]} : vector<8x128xf32> to vector<3x128xf32>
    %69 = arith.addf %67, %68 : vector<3x128xf32>
    %70 = arith.addf %66, %69 : vector<3x128xf32>
    %c0_29 = arith.constant 0 : index
    %c0_30 = arith.constant 0 : index
    %71 = vector.load %arg14[%c0_29, %c0_30] : memref<3x128xf32, #tpu.memory_space<vmem>>, vector<3x128xf32>
    tpu.vector_store %arg14[%c0_29, %c0_30], %70 {strides = array<i32>} : memref<3x128xf32, #tpu.memory_space<vmem>>, vector<3x128xf32>,
    %c0_i32_31 = arith.constant 0 : i32
    %72 = arith.cmpi eq, %arg1, %c0_i32_31 : i32
    %73 = arith.extui %72 : i1 to i32
    %c0_i32_32 = arith.constant 0 : i32
    %74 = arith.cmpi ne, %73, %c0_i32_32 : i32
    scf.if %74 {
      %c0_33 = arith.constant 0 : index
      %c0_34 = arith.constant 0 : index
      %75 = vector.load %arg13[%c0_33, %c0_34] : memref<3x128xf32, #tpu.memory_space<vmem>>, vector<3x128xf32>
      %c0_35 = arith.constant 0 : index
      %c0_36 = arith.constant 0 : index
      %76 = vector.load %arg14[%c0_35, %c0_36] : memref<3x128xf32, #tpu.memory_space<vmem>>, vector<3x128xf32>
      %c0_37 = arith.constant 0 : index
      %c0_38 = arith.constant 0 : index
      %77 = vector.load %arg4[%c0_37, %c0_38] : memref<1x128xf32, #tpu.memory_space<vmem>>, vector<1x128xf32>
      %78 = vector.broadcast %77 : vector<1x128xf32> to vector<3x128xf32>
      %79 = arith.mulf %76, %78 : vector<3x128xf32>
      %80 = arith.addf %75, %79 : vector<3x128xf32>
      %c0_39 = arith.constant 0 : index
      %c0_40 = arith.constant 0 : index
      %81 = vector.load %arg3[%c0_39, %c0_40] : memref<3x128xf32, #tpu.memory_space<vmem>>, vector<3x128xf32>
      %c0_41 = arith.constant 0 : index
      %c0_42 = arith.constant 0 : index
      %c0_43 = arith.constant 0 : index
      %82 = vector.load %arg5[%c0_41, %c0_42, %c0_43] : memref<1x1x128xf32, #tpu.memory_space<vmem>>, vector<1x1x128xf32>
      %83 = vector.shape_cast %82 : vector<1x1x128xf32> to vector<1x128xf32>
      %84 = vector.broadcast %83 : vector<1x128xf32> to vector<3x128xf32>
      %85 = arith.mulf %81, %84 : vector<3x128xf32>
      %86 = arith.addf %80, %85 : vector<3x128xf32>
      %c0_44 = arith.constant 0 : index
      %c0_45 = arith.constant 0 : index
      %87 = vector.load %arg13[%c0_44, %c0_45] : memref<3x128xf32, #tpu.memory_space<vmem>>, vector<3x128xf32>
      tpu.vector_store %arg13[%c0_44, %c0_45], %86 {strides = array<i32>} : memref<3x128xf32, #tpu.memory_space<vmem>>, vector<3x128xf32>,
      %c0_46 = arith.constant 0 : index
      %c0_47 = arith.constant 0 : index
      %88 = vector.load %arg12[%c0_46, %c0_47] : memref<3x128xf32, #tpu.memory_space<vmem>>, vector<3x128xf32>
      tpu.vector_store %arg12[%c0_46, %c0_47], %86 {strides = array<i32>} : memref<3x128xf32, #tpu.memory_space<vmem>>, vector<3x128xf32>,
    } else {
    }
    return
  }
  func.func @transform_0(%arg0: i32, %arg1: i32) -> (i32, i32) {
    %c0_i32 = arith.constant 0 : i32
    %c0_i32_0 = arith.constant 0 : i32
    %c0_i32_1 = arith.constant 0 : i32
    return %c0_i32, %c0_i32_0 : i32, i32
  }
  func.func @transform_1(%arg0: i32, %arg1: i32) -> (i32, i32) {
    %c0_i32 = arith.constant 0 : i32
    %c0_i32_0 = arith.constant 0 : i32
    %c0_i32_1 = arith.constant 0 : i32
    return %c0_i32, %c0_i32_0 : i32, i32
  }
  func.func @transform_2(%arg0: i32, %arg1: i32) -> (i32, i32) {
    %c0_i32 = arith.constant 0 : i32
    %c0_i32_0 = arith.constant 0 : i32
    %c0_i32_1 = arith.constant 0 : i32
    return %c0_i32, %c0_i32_0 : i32, i32
  }
  func.func @transform_3(%arg0: i32, %arg1: i32) -> (i32, i32, i32) {
    %c0_i32 = arith.constant 0 : i32
    %c0_i32_0 = arith.constant 0 : i32
    %c0_i32_1 = arith.constant 0 : i32
    return %arg0, %c0_i32, %c0_i32_0 : i32, i32, i32
  }
  func.func @transform_4(%arg0: i32, %arg1: i32) -> (i32, i32) {
    %c0_i32 = arith.constant 0 : i32
    %c0_i32_0 = arith.constant 0 : i32
    return %c0_i32, %arg1 : i32, i32
  }
  func.func @transform_5(%arg0: i32, %arg1: i32) -> (i32, i32) {
    %c0_i32 = arith.constant 0 : i32
    %c0_i32_0 = arith.constant 0 : i32
    return %arg1, %c0_i32 : i32, i32
  }
  func.func @transform_6(%arg0: i32, %arg1: i32) -> (i32, i32, i32) {
    %c0_i32 = arith.constant 0 : i32
    %c0_i32_0 = arith.constant 0 : i32
    return %arg0, %c0_i32, %arg1 : i32, i32, i32
  }
  func.func @transform_7(%arg0: i32, %arg1: i32) -> (i32, i32, i32) {
    %c0_i32 = arith.constant 0 : i32
    %c0_i32_0 = arith.constant 0 : i32
    %c0_i32_1 = arith.constant 0 : i32
    return %arg0, %c0_i32, %c0_i32_0 : i32, i32, i32
  }
  func.func @transform_8(%arg0: i32, %arg1: i32) -> (i32, i32, i32) {
    %c0_i32 = arith.constant 0 : i32
    %c0_i32_0 = arith.constant 0 : i32
    %c0_i32_1 = arith.constant 0 : i32
    return %arg0, %c0_i32, %c0_i32_0 : i32, i32, i32
  }
  func.func @transform_9(%arg0: i32, %arg1: i32) -> (i32, i32, i32) {
    %c0_i32 = arith.constant 0 : i32
    %c0_i32_0 = arith.constant 0 : i32
    %c0_i32_1 = arith.constant 0 : i32
    return %arg0, %c0_i32, %c0_i32_0 : i32, i32, i32
  }
  func.func @transform_10(%arg0: i32, %arg1: i32) -> (i32, i32) {
    %c0_i32 = arith.constant 0 : i32
    %c0_i32_0 = arith.constant 0 : i32
    %c0_i32_1 = arith.constant 0 : i32
    return %c0_i32, %c0_i32_0 : i32, i32
  }
}

</mosaic_0001>

<llo_original>
// kernel: tpu_custom_call.1
$region0: #{tpu_custom_call.1}
  #allocation0 [shape = 'u32[]', space=smem, size = 0x4, offset = 0x4, fixed_abs, tag = 'smem constant byte address 0x4 - core index']
  #allocation1 [shape = 'u32[72,128]{1,0:T(1,128)}', space=vmem, size = 0x9000, scoped, tag = 'internal scratch']
  #allocation2 [shape = 'f32[3,128]{1,0:T(4,128)}', space=vmem, size = 0x800, scoped, tag = 'scratch operand']
  #allocation3 [shape = 'f32[3,128]{1,0:T(4,128)}', space=vmem, size = 0x800, scoped, tag = 'scratch operand']
  %s0 = inlined_call_operand.vmem [shape: f32[3,128], index: 0, kind: input, shape index: {}]
  %s1 = inlined_call_operand.vmem [shape: f32[3,128], index: 1, kind: input, shape index: {}]
  %s2 = inlined_call_operand.vmem [shape: f32[1,128], index: 2, kind: input, shape index: {}]
  %s3 = inlined_call_operand.vmem [shape: f32[4,1,128], index: 3, kind: input, shape index: {}]
  %s4 = inlined_call_operand.vmem [shape: bf16[128,128], index: 4, kind: input, shape index: {}]
  %s5 = inlined_call_operand.vmem [shape: bf16[128,128], index: 5, kind: input, shape index: {}]
  %s6 = inlined_call_operand.vmem [shape: bf16[4,32,128], index: 6, kind: input, shape index: {}]
  %s7 = inlined_call_operand.vmem [shape: f32[4,32,1], index: 7, kind: input, shape index: {}]
  %s8 = inlined_call_operand.vmem [shape: f32[4,32,1], index: 8, kind: input, shape index: {}]
  %s9 = inlined_call_operand.vmem [shape: f32[4,32,1], index: 9, kind: input, shape index: {}]
  %s10 = inlined_call_operand.hbm [shape: f32[3,128], index: 10, kind: output, shape index: {}]
  %s11 = sld [smem:[#allocation0]]
  $region85: #{tpu_custom_call.1} parent=0
    _
  %s13 = ssub.s32 1, %s11
  %s14 = scalar_select 0, %s13, %s11
  $region1: #{tpu_custom_call.1} parent=0
    #allocation4 [shape = 'u8[2048]{0}', space=vmem, size = 0x800, scoped, tag = 'output window, operand 0, single buffered']
    #allocation5 [shape = 's32[2]{0}', space=sflag, size = 0x8, scoped, tag = 'scoped memory for tpu_custom_call.1']
    %15 = vsyncpa [#allocation5], 0
    loop: start=0, step=1, limit=6
    $region2: #{tpu_custom_call.1} parent=1 // loop_pre_header
      _
    $region3: #{tpu_custom_call.1} parent=1 // loop_header
      %s17 = sphi 0, %s21
      %p18 = scmp.ge.s32.totalorder %s17, 6
      %s24 = sphi 0, %s36
      %s25 = sphi 0, %s32
      %s26 = sphi 0, %s24
      %s27 = sphi 0, %s25
      %s28 = sphi 0, %s26
      %s29 = sphi 0, %s27
      %s37 = sphi 0, %s37
      %s39 = sphi 0, %s37
      %s40 = sphi 0, %s39
      %s54 = sphi 0, %s40
      %s58 = sphi 0, %s58
      %s60 = sphi 0, %s58
      %s61 = sphi 0, %s60
      %s75 = sphi 0, %s61
      %s79 = sphi 0, %s79
      %s81 = sphi 0, %s79
      %s82 = sphi 0, %s81
      %s96 = sphi 0, %s82
      %s102 = sphi 0, %s104
      %s105 = sphi 0, %s102
      %s106 = sphi 0, %s105
      %s122 = sphi 0, %s106
      %s128 = sphi 0, %s130
      %s131 = sphi 0, %s128
      %s132 = sphi 0, %s131
      %s148 = sphi 0, %s132
      %s154 = sphi 0, %s156
      %s157 = sphi 0, %s154
      %s158 = sphi 0, %s157
      %s174 = sphi 0, %s158
      %s182 = sphi 0, %s184
      %s185 = sphi 0, %s182
      %s186 = sphi 0, %s185
      %s202 = sphi 0, %s186
      %s208 = sphi 0, %s210
      %s211 = sphi 0, %s208
      %s212 = sphi 0, %s211
      %s228 = sphi 0, %s212
      %s234 = sphi 0, %s236
      %s237 = sphi 0, %s234
      %s238 = sphi 0, %s237
      %s254 = sphi 0, %s238
      %s260 = sphi 0, %s262
      %s263 = sphi 0, %s260
      %s264 = sphi 0, %s263
      %s280 = sphi 0, %s264
      %s284 = sphi 0, %s284
      %s286 = sphi 0, %s284
      %s287 = sphi 0, %s286
      %s301 = sphi 0, %s287
    $region4: #{tpu_custom_call.1} parent=1 // loop_header_branch
      %20 = sbr.rel (%p18) target = $region8
    $region5: #{tpu_custom_call.1} parent=1 // loop_body
      %s22 = ssub.s32 %s17, 1
      %s23 = ssub.s32 %s17, 2
      %s30 = sadd.s32 1, %s25
      %p31 = scmp.ge.s32.totalorder %s30, 1
      %s32 = scalar_select %p31, 0, %s30
      %s33 = sadd.s32 1, %s24
      %s34 = scalar_select %p31, %s33, %s24
      %p35 = scmp.ge.s32.totalorder %s34, 4
      %s36 = scalar_select %p35, 0, %s34
      %s38 = sadd.s32 %s37, 1
      %p41 = scmp.eq.s32.totalorder %s17, 3
      %p42 = scmp.ne.s32.totalorder %s37, %s39
      %p43 = scmp.eq.s32.totalorder %s17, 0
      %p44 = por %p42, %p43
      %p45 = scmp.ne.s32.totalorder %s37, %s39
      %p46 = scmp.eq.s32.totalorder %s22, 3
      %p47 = por %p45, %p46
      %p48 = scmp.ne.s32.totalorder %s39, %s40
      %p49 = scmp.eq.s32.totalorder %s22, 0
      %p50 = por %p48, %p49
      %p51 = scmp.ne.s32.totalorder %s39, %s40
      %p52 = scmp.eq.s32.totalorder %s23, 3
      %p53 = por %p51, %p52
      %p55 = scmp.ne.s32.totalorder %s40, %s54
      %p56 = scmp.eq.s32.totalorder %s23, 0
      %p57 = por %p55, %p56
      %s59 = sadd.s32 %s58, 1
      %p62 = scmp.eq.s32.totalorder %s17, 3
      %p63 = scmp.ne.s32.totalorder %s58, %s60
      %p64 = scmp.eq.s32.totalorder %s17, 0
      %p65 = por %p63, %p64
      %p66 = scmp.ne.s32.totalorder %s58, %s60
      %p67 = scmp.eq.s32.totalorder %s22, 3
      %p68 = por %p66, %p67
      %p69 = scmp.ne.s32.totalorder %s60, %s61
      %p70 = scmp.eq.s32.totalorder %s22, 0
      %p71 = por %p69, %p70
      %p72 = scmp.ne.s32.totalorder %s60, %s61
      %p73 = scmp.eq.s32.totalorder %s23, 3
      %p74 = por %p72, %p73
      %p76 = scmp.ne.s32.totalorder %s61, %s75
      %p77 = scmp.eq.s32.totalorder %s23, 0
      %p78 = por %p76, %p77
      %s80 = sadd.s32 %s79, 1
      %p83 = scmp.eq.s32.totalorder %s17, 3
      %p84 = scmp.ne.s32.totalorder %s79, %s81
      %p85 = scmp.eq.s32.totalorder %s17, 0
      %p86 = por %p84, %p85
      %p87 = scmp.ne.s32.totalorder %s79, %s81
      %p88 = scmp.eq.s32.totalorder %s22, 3
      %p89 = por %p87, %p88
      %p90 = scmp.ne.s32.totalorder %s81, %s82
      %p91 = scmp.eq.s32.totalorder %s22, 0
      %p92 = por %p90, %p91
      %p93 = scmp.ne.s32.totalorder %s81, %s82
      %p94 = scmp.eq.s32.totalorder %s23, 3
      %p95 = por %p93, %p94
      %p97 = scmp.ne.s32.totalorder %s82, %s96
      %p98 = scmp.eq.s32.totalorder %s23, 0
      %p99 = por %p97, %p98
      %s100 = ssub.s32 %s24, %s36
      %p101 = scmp.eq.s32.totalorder %s100, 0
      %s103 = sadd.s32 %s102, 1
      %s104 = scalar_select %p101, %s102, %s103
      %p107 = pneg %p101
      %p108 = scmp.eq.s32.totalorder %s17, 3
      %p109 = por %p107, %p108
      %p110 = scmp.ne.s32.totalorder %s102, %s105
      %p111 = scmp.eq.s32.totalorder %s17, 0
      %p112 = por %p110, %p111
      %p113 = scmp.ne.s32.totalorder %s102, %s105
      %p114 = scmp.eq.s32.totalorder %s22, 3
      %p115 = por %p113, %p114
      %p116 = scmp.ne.s32.totalorder %s105, %s106
      %p117 = scmp.eq.s32.totalorder %s22, 0
      %p118 = por %p116, %p117
      %p119 = scmp.ne.s32.totalorder %s105, %s106
      %p120 = scmp.eq.s32.totalorder %s23, 3
      %p121 = por %p119, %p120
      %p123 = scmp.ne.s32.totalorder %s106, %s122
      %p124 = scmp.eq.s32.totalorder %s23, 0
      %p125 = por %p123, %p124
      %s126 = ssub.s32 %s25, %s32
      %p127 = scmp.eq.s32.totalorder %s126, 0
      %s129 = sadd.s32 %s128, 1
      %s130 = scalar_select %p127, %s128, %s129
      %p133 = pneg %p127
      %p134 = scmp.eq.s32.totalorder %s17, 3
      %p135 = por %p133, %p134
      %p136 = scmp.ne.s32.totalorder %s128, %s131
      %p137 = scmp.eq.s32.totalorder %s17, 0
      %p138 = por %p136, %p137
      %p139 = scmp.ne.s32.totalorder %s128, %s131
      %p140 = scmp.eq.s32.totalorder %s22, 3
      %p141 = por %p139, %p140
      %p142 = scmp.ne.s32.totalorder %s131, %s132
      %p143 = scmp.eq.s32.totalorder %s22, 0
      %p144 = por %p142, %p143
      %p145 = scmp.ne.s32.totalorder %s131, %s132
      %p146 = scmp.eq.s32.totalorder %s23, 3
      %p147 = por %p145, %p146
      %p149 = scmp.ne.s32.totalorder %s132, %s148
      %p150 = scmp.eq.s32.totalorder %s23, 0
      %p151 = por %p149, %p150
      %s152 = ssub.s32 %s25, %s32
      %p153 = scmp.eq.s32.totalorder %s152, 0
      %s155 = sadd.s32 %s154, 1
      %s156 = scalar_select %p153, %s154, %s155
      %p159 = pneg %p153
      %p160 = scmp.eq.s32.totalorder %s17, 3
      %p161 = por %p159, %p160
      %p162 = scmp.ne.s32.totalorder %s154, %s157
      %p163 = scmp.eq.s32.totalorder %s17, 0
      %p164 = por %p162, %p163
      %p165 = scmp.ne.s32.totalorder %s154, %s157
      %p166 = scmp.eq.s32.totalorder %s22, 3
      %p167 = por %p165, %p166
      %p168 = scmp.ne.s32.totalorder %s157, %s158
      %p169 = scmp.eq.s32.totalorder %s22, 0
      %p170 = por %p168, %p169
      %p171 = scmp.ne.s32.totalorder %s157, %s158
      %p172 = scmp.eq.s32.totalorder %s23, 3
      %p173 = por %p171, %p172
      %p175 = scmp.ne.s32.totalorder %s158, %s174
      %p176 = scmp.eq.s32.totalorder %s23, 0
      %p177 = por %p175, %p176
      %s178 = ssub.s32 %s24, %s36
      %s179 = ssub.s32 %s25, %s32
      %s180 = sor.u32 %s178, %s179
      %p181 = scmp.eq.s32.totalorder %s180, 0
      %s183 = sadd.s32 %s182, 1
      %s184 = scalar_select %p181, %s182, %s183
      %p187 = pneg %p181
      %p188 = scmp.eq.s32.totalorder %s17, 3
      %p189 = por %p187, %p188
      %p190 = scmp.ne.s32.totalorder %s182, %s185
      %p191 = scmp.eq.s32.totalorder %s17, 0
      %p192 = por %p190, %p191
      %p193 = scmp.ne.s32.totalorder %s182, %s185
      %p194 = scmp.eq.s32.totalorder %s22, 3
      %p195 = por %p193, %p194
      %p196 = scmp.ne.s32.totalorder %s185, %s186
      %p197 = scmp.eq.s32.totalorder %s22, 0
      %p198 = por %p196, %p197
      %p199 = scmp.ne.s32.totalorder %s185, %s186
      %p200 = scmp.eq.s32.totalorder %s23, 3
      %p201 = por %p199, %p200
      %p203 = scmp.ne.s32.totalorder %s186, %s202
      %p204 = scmp.eq.s32.totalorder %s23, 0
      %p205 = por %p203, %p204
      %s206 = ssub.s32 %s24, %s36
      %p207 = scmp.eq.s32.totalorder %s206, 0
      %s209 = sadd.s32 %s208, 1
      %s210 = scalar_select %p207, %s208, %s209
      %p213 = pneg %p207
      %p214 = scmp.eq.s32.totalorder %s17, 3
      %p215 = por %p213, %p214
      %p216 = scmp.ne.s32.totalorder %s208, %s211
      %p217 = scmp.eq.s32.totalorder %s17, 0
      %p218 = por %p216, %p217
      %p219 = scmp.ne.s32.totalorder %s208, %s211
      %p220 = scmp.eq.s32.totalorder %s22, 3
      %p221 = por %p219, %p220
      %p222 = scmp.ne.s32.totalorder %s211, %s212
      %p223 = scmp.eq.s32.totalorder %s22, 0
      %p224 = por %p222, %p223
      %p225 = scmp.ne.s32.totalorder %s211, %s212
      %p226 = scmp.eq.s32.totalorder %s23, 3
      %p227 = por %p225, %p226
      %p229 = scmp.ne.s32.totalorder %s212, %s228
      %p230 = scmp.eq.s32.totalorder %s23, 0
      %p231 = por %p229, %p230
      %s232 = ssub.s32 %s24, %s36
      %p233 = scmp.eq.s32.totalorder %s232, 0
      %s235 = sadd.s32 %s234, 1
      %s236 = scalar_select %p233, %s234, %s235
      %p239 = pneg %p233
      %p240 = scmp.eq.s32.totalorder %s17, 3
      %p241 = por %p239, %p240
      %p242 = scmp.ne.s32.totalorder %s234, %s237
      %p243 = scmp.eq.s32.totalorder %s17, 0
      %p244 = por %p242, %p243
      %p245 = scmp.ne.s32.totalorder %s234, %s237
      %p246 = scmp.eq.s32.totalorder %s22, 3
      %p247 = por %p245, %p246
      %p248 = scmp.ne.s32.totalorder %s237, %s238
      %p249 = scmp.eq.s32.totalorder %s22, 0
      %p250 = por %p248, %p249
      %p251 = scmp.ne.s32.totalorder %s237, %s238
      %p252 = scmp.eq.s32.totalorder %s23, 3
      %p253 = por %p251, %p252
      %p255 = scmp.ne.s32.totalorder %s238, %s254
      %p256 = scmp.eq.s32.totalorder %s23, 0
      %p257 = por %p255, %p256
      %s258 = ssub.s32 %s24, %s36
      %p259 = scmp.eq.s32.totalorder %s258, 0
      %s261 = sadd.s32 %s260, 1
      %s262 = scalar_select %p259, %s260, %s261
      %p265 = pneg %p259
      %p266 = scmp.eq.s32.totalorder %s17, 3
      %p267 = por %p265, %p266
      %p268 = scmp.ne.s32.totalorder %s260, %s263
      %p269 = scmp.eq.s32.totalorder %s17, 0
      %p270 = por %p268, %p269
      %p271 = scmp.ne.s32.totalorder %s260, %s263
      %p272 = scmp.eq.s32.totalorder %s22, 3
      %p273 = por %p271, %p272
      %p274 = scmp.ne.s32.totalorder %s263, %s264
      %p275 = scmp.eq.s32.totalorder %s22, 0
      %p276 = por %p274, %p275
      %p277 = scmp.ne.s32.totalorder %s263, %s264
      %p278 = scmp.eq.s32.totalorder %s23, 3
      %p279 = por %p277, %p278
      %p281 = scmp.ne.s32.totalorder %s264, %s280
      %p282 = scmp.eq.s32.totalorder %s23, 0
      %p283 = por %p281, %p282
      %s285 = sadd.s32 %s284, 1
      %p288 = scmp.eq.s32.totalorder %s17, 3
      %p289 = scmp.ne.s32.totalorder %s284, %s286
      %p290 = scmp.eq.s32.totalorder %s17, 0
      %p291 = por %p289, %p290
      %p292 = scmp.ne.s32.totalorder %s284, %s286
      %p293 = scmp.eq.s32.totalorder %s22, 3
      %p294 = por %p292, %p293
      %p295 = scmp.ne.s32.totalorder %s286, %s287
      %p296 = scmp.eq.s32.totalorder %s22, 0
      %p297 = por %p295, %p296
      %p298 = scmp.ne.s32.totalorder %s286, %s287
      %p299 = scmp.eq.s32.totalorder %s23, 3
      %p300 = por %p298, %p299
      %p302 = scmp.ne.s32.totalorder %s287, %s301
      %p303 = scmp.eq.s32.totalorder %s23, 0
      %p304 = por %p302, %p303
      %p305 = scmp.le.s32.totalorder 1, %s17
      %p306 = scmp.lt.s32.totalorder %s17, 5
      %p307 = pnand %p305, %p306
      %p308 = pneg %p307
      // Predicated region
      $region9: #{tpu_custom_call.1} parent=5 // pred_check
        _
      $region10: #{tpu_custom_call.1} parent=5 // pred_check_branch
        %310 = sbr.rel (%p307) target = $region12
      $region11: #{tpu_custom_call.1} parent=5 // pred_region
        %s311 = ssub.s32 %s17, 1
        // Predicated region
        $region13: #{tpu_custom_call.1} parent=11 // pred_check
          %p312 = pneg %p50
        $region14: #{tpu_custom_call.1} parent=11 // pred_check_branch
          %314 = sbr.rel (%p312) target = $region16
        $region15: #{tpu_custom_call.1} parent=11 // pred_region
          _
        $region16: #{tpu_custom_call.1} parent=11 // pred_fallthru
          _
        // Predicated region
        $region17: #{tpu_custom_call.1} parent=11 // pred_check
          %p315 = pneg %p71
        $region18: #{tpu_custom_call.1} parent=11 // pred_check_branch
          %317 = sbr.rel (%p315) target = $region20
        $region19: #{tpu_custom_call.1} parent=11 // pred_region
          _
        $region20: #{tpu_custom_call.1} parent=11 // pred_fallthru
          _
        // Predicated region
        $region21: #{tpu_custom_call.1} parent=11 // pred_check
          %p318 = pneg %p92
        $region22: #{tpu_custom_call.1} parent=11 // pred_check_branch
          %320 = sbr.rel (%p318) target = $region24
        $region23: #{tpu_custom_call.1} parent=11 // pred_region
          _
        $region24: #{tpu_custom_call.1} parent=11 // pred_fallthru
          _
        // Predicated region
        $region25: #{tpu_custom_call.1} parent=11 // pred_check
          %p321 = pneg %p144
        $region26: #{tpu_custom_call.1} parent=11 // pred_check_branch
          %323 = sbr.rel (%p321) target = $region28
        $region27: #{tpu_custom_call.1} parent=11 // pred_region
          %p324 = scmp.lt.s32.totalorder %s27, 0
          %s325 = scalar_select %p324, %s27, 0
          %s326 = smul.addr %s325, 4
          %s327 = scalar_lea.vmem %s4, %s326
        $region28: #{tpu_custom_call.1} parent=11 // pred_fallthru
          _
        // Predicated region
        $region29: #{tpu_custom_call.1} parent=11 // pred_check
          %p328 = pneg %p170
        $region30: #{tpu_custom_call.1} parent=11 // pred_check_branch
          %330 = sbr.rel (%p328) target = $region32
        $region31: #{tpu_custom_call.1} parent=11 // pred_region
          %s331 = smul.u32 16, %s27
          %p332 = scmp.lt.s32.totalorder %s331, 15
          %s333 = scalar_select %p332, %s331, 15
          %s334 = smul.addr %s333, 4
          %s335 = scalar_lea.vmem %s5, %s334
          %s336 = smul.u32 16, %s27
        $region32: #{tpu_custom_call.1} parent=11 // pred_fallthru
          _
      $region12: #{tpu_custom_call.1} parent=5 // pred_fallthru
        _
      %p337 = scmp.lt.s32.totalorder %s17, 4
      // Predicated region
      $region33: #{tpu_custom_call.1} parent=5 // pred_check
        %p338 = pneg %p337
      $region34: #{tpu_custom_call.1} parent=5 // pred_check_branch
        %340 = sbr.rel (%p338) target = $region36
      $region35: #{tpu_custom_call.1} parent=5 // pred_region
        // Predicated region
        $region37: #{tpu_custom_call.1} parent=35 // pred_check
          %p341 = pneg %p112
        $region38: #{tpu_custom_call.1} parent=35 // pred_check_branch
          %343 = sbr.rel (%p341) target = $region40
        $region39: #{tpu_custom_call.1} parent=35 // pred_region
          %p344 = scmp.lt.s32.totalorder %s24, 3
          %s345 = scalar_select %p344, %s24, 3
          %s346 = scalar_lea.vmem %s3, %s345
        $region40: #{tpu_custom_call.1} parent=35 // pred_fallthru
          _
        // Predicated region
        $region41: #{tpu_custom_call.1} parent=35 // pred_check
          %p347 = pneg %p192
        $region42: #{tpu_custom_call.1} parent=35 // pred_check_branch
          %349 = sbr.rel (%p347) target = $region44
        $region43: #{tpu_custom_call.1} parent=35 // pred_region
          %p350 = scmp.lt.s32.totalorder %s24, 3
          %s351 = scalar_select %p350, %s24, 3
          %p352 = scmp.lt.s32.totalorder %s25, 0
          %s353 = scalar_select %p352, %s25, 0
          %s354 = smul.addr %s351, 4
          %s355 = sadd.s32 %s353, %s354
          %s356 = smul.addr %s355, 4
          %s357 = scalar_lea.vmem %s6, %s356
        $region44: #{tpu_custom_call.1} parent=35 // pred_fallthru
          _
        // Predicated region
        $region45: #{tpu_custom_call.1} parent=35 // pred_check
          %p358 = pneg %p218
        $region46: #{tpu_custom_call.1} parent=35 // pred_check_branch
          %360 = sbr.rel (%p358) target = $region48
        $region47: #{tpu_custom_call.1} parent=35 // pred_region
          %p361 = scmp.lt.s32.totalorder %s24, 3
          %s362 = scalar_select %p361, %s24, 3
          %s363 = smul.addr %s362, 4
          %s364 = smul.addr %s363, 8
          %s365 = scalar_lea.vmem %s7, %s364
        $region48: #{tpu_custom_call.1} parent=35 // pred_fallthru
          _
        // Predicated region
        $region49: #{tpu_custom_call.1} parent=35 // pred_check
          %p366 = pneg %p244
        $region50: #{tpu_custom_call.1} parent=35 // pred_check_branch
          %368 = sbr.rel (%p366) target = $region52
        $region51: #{tpu_custom_call.1} parent=35 // pred_region
          %p369 = scmp.lt.s32.totalorder %s24, 3
          %s370 = scalar_select %p369, %s24, 3
          %s371 = smul.addr %s370, 4
          %s372 = smul.addr %s371, 8
          %s373 = scalar_lea.vmem %s8, %s372
        $region52: #{tpu_custom_call.1} parent=35 // pred_fallthru
          _
        // Predicated region
        $region53: #{tpu_custom_call.1} parent=35 // pred_check
          %p374 = pneg %p270
        $region54: #{tpu_custom_call.1} parent=35 // pred_check_branch
          %376 = sbr.rel (%p374) target = $region56
        $region55: #{tpu_custom_call.1} parent=35 // pred_region
          %p377 = scmp.lt.s32.totalorder %s24, 3
          %s378 = scalar_select %p377, %s24, 3
          %s379 = smul.addr %s378, 4
          %s380 = smul.addr %s379, 8
          %s381 = scalar_lea.vmem %s9, %s380
        $region56: #{tpu_custom_call.1} parent=35 // pred_fallthru
          _
      $region36: #{tpu_custom_call.1} parent=5 // pred_fallthru
        _
      %p382 = scmp.le.s32.totalorder 1, %s17
      %p383 = scmp.lt.s32.totalorder %s17, 5
      %p384 = pnand %p382, %p383
      %p385 = pneg %p384
      // Predicated region
      $region57: #{tpu_custom_call.1} parent=5 // pred_check
        _
      $region58: #{tpu_custom_call.1} parent=5 // pred_check_branch
        %387 = sbr.rel (%p384) target = $region60
      $region59: #{tpu_custom_call.1} parent=5 // pred_region
        %s388 = ssub.s32 %s17, 1
        %p389 = pneg %p50
        %p390 = pneg %p47
        %p391 = pneg %p71
        %p392 = pneg %p68
        %p393 = pneg %p92
        %p394 = pneg %p89
        %p395 = scmp.lt.s32.totalorder %s26, 3
        %s396 = scalar_select %p395, %s26, 3
        %s397 = scalar_lea.vmem %s3, %s396
        %p398 = pneg %p118
        %p399 = pneg %p115
        %p400 = scmp.lt.s32.totalorder %s27, 0
        %s401 = scalar_select %p400, %s27, 0
        %s402 = smul.addr %s401, 4
        %s403 = scalar_lea.vmem %s4, %s402
        %p404 = pneg %p144
        %p405 = pneg %p141
        %s406 = smul.u32 16, %s27
        %p407 = scmp.lt.s32.totalorder %s406, 15
        %s408 = scalar_select %p407, %s406, 15
        %s409 = smul.addr %s408, 4
        %s410 = scalar_lea.vmem %s5, %s409
        %p411 = pneg %p170
        %p412 = pneg %p167
        %p413 = scmp.lt.s32.totalorder %s26, 3
        %s414 = scalar_select %p413, %s26, 3
        %p415 = scmp.lt.s32.totalorder %s27, 0
        %s416 = scalar_select %p415, %s27, 0
        %s417 = smul.addr %s414, 4
        %s418 = sadd.s32 %s416, %s417
        %s419 = smul.addr %s418, 4
        %s420 = scalar_lea.vmem %s6, %s419
        %p421 = pneg %p198
        %p422 = pneg %p195
        %p423 = scmp.lt.s32.totalorder %s26, 3
        %s424 = scalar_select %p423, %s26, 3
        %s425 = smul.addr %s424, 4
        %s426 = smul.addr %s425, 8
        %s427 = scalar_lea.vmem %s7, %s426
        %p428 = pneg %p224
        %p429 = pneg %p221
        %p430 = scmp.lt.s32.totalorder %s26, 3
        %s431 = scalar_select %p430, %s26, 3
        %s432 = smul.addr %s431, 4
        %s433 = smul.addr %s432, 8
        %s434 = scalar_lea.vmem %s8, %s433
        %p435 = pneg %p250
        %p436 = pneg %p247
        %p437 = scmp.lt.s32.totalorder %s26, 3
        %s438 = scalar_select %p437, %s26, 3
        %s439 = smul.addr %s438, 4
        %s440 = smul.addr %s439, 8
        %s441 = scalar_lea.vmem %s9, %s440
        %p442 = pneg %p276
        %p443 = pneg %p273
        %p444 = pneg %p297
        %p445 = pneg %p294
        %p446 = scmp.lt.s32.totalorder %s26, 3
        %s447 = scalar_select %p446, %s26, 3
        %s448 = scalar_lea.vmem %s3, %s447
        %p449 = scmp.lt.s32.totalorder %s27, 0
        %s450 = scalar_select %p449, %s27, 0
        %s451 = smul.addr %s450, 4
        %s452 = scalar_lea.vmem %s4, %s451
        %s453 = smul.u32 16, %s27
        %p454 = scmp.lt.s32.totalorder %s453, 15
        %s455 = scalar_select %p454, %s453, 15
        %s456 = smul.addr %s455, 4
        %s457 = scalar_lea.vmem %s5, %s456
        %s458 = smul.u32 16, %s27
        %p459 = scmp.lt.s32.totalorder %s26, 3
        %s460 = scalar_select %p459, %s26, 3
        %p461 = scmp.lt.s32.totalorder %s27, 0
        %s462 = scalar_select %p461, %s27, 0
        %s463 = smul.addr %s460, 4
        %s464 = sadd.s32 %s462, %s463
        %s465 = smul.addr %s464, 4
        %s466 = scalar_lea.vmem %s6, %s465
        %p467 = scmp.lt.s32.totalorder %s26, 3
        %s468 = scalar_select %p467, %s26, 3
        %s469 = smul.addr %s468, 4
        %s470 = smul.addr %s469, 8
        %s471 = scalar_lea.vmem %s7, %s470
        %p472 = scmp.lt.s32.totalorder %s26, 3
        %s473 = scalar_select %p472, %s26, 3
        %s474 = smul.addr %s473, 4
        %s475 = smul.addr %s474, 8
        %s476 = scalar_lea.vmem %s8, %s475
        %p477 = scmp.lt.s32.totalorder %s26, 3
        %s478 = scalar_select %p477, %s26, 3
        %s479 = smul.addr %s478, 4
        %s480 = smul.addr %s479, 8
        %s481 = scalar_lea.vmem %s9, %s480
        %p482 = scmp.eq.s32.totalorder %s26, 0
        %p483 = scmp.eq.s32.totalorder %s27, 0
        %p484 = pnand %p482, %p483
        %p485 = pneg %p484
        // Predicated region
        $region61: #{tpu_custom_call.1} parent=59 // pred_check
          _
        $region62: #{tpu_custom_call.1} parent=59 // pred_check_branch
          %487 = sbr.rel (%p484) target = $region64
        $region63: #{tpu_custom_call.1} parent=59 // pred_region
          %v488 = vld [vmem:[%s0] sm:$0x7]
          %489 = vst [vmem:[#allocation2] sm:$0x7] %v488
        $region64: #{tpu_custom_call.1} parent=59 // pred_fallthru
          _
        // Predicated region
        $region65: #{tpu_custom_call.1} parent=59 // pred_check
          %p490 = pneg %p483
        $region66: #{tpu_custom_call.1} parent=59 // pred_check_branch
          %492 = sbr.rel (%p490) target = $region68
        $region67: #{tpu_custom_call.1} parent=59 // pred_region
          %493 = vst [vmem:[#allocation3] sm:$0x7] 0.0
        $region68: #{tpu_custom_call.1} parent=59 // pred_fallthru
          _
        %v494 = vld [vmem:[#allocation2] sm:$0x7]
        %v495 = vpack.c.bf16 %v494, %v494
        %v496 = vunpack.c.l.bf16 %v495
        %v497 = vsub.f32 %v494, %v496
        %v499 = vrot.slane %v497, 5
        %vm501 = vcmask 1042432
        %v502 = vsel %vm501, %v496, %v499
        %vm503 = vcmask 1045504
        %v504 = vsel %vm503, %v502, 0.0
        %v505 = vpack.c.bf16 %v504, %v504
        %v506 = vld [vmem:[%s452] sm:$0xf]
        %v507 = vld [vmem:[%s452 + $0x4] sm:$0xf]
        %v508 = vld [vmem:[%s452 + $0x8] sm:$0xf]
        %v509 = vld [vmem:[%s452 + $0xc] sm:$0xf]
        %v510 = vld [vmem:[%s452 + $0x10] sm:$0xf]
        %v511 = vld [vmem:[%s452 + $0x14] sm:$0xf]
        %v512 = vld [vmem:[%s452 + $0x18] sm:$0xf]
        %v513 = vld [vmem:[%s452 + $0x1c] sm:$0xf]
        %v514 = vld [vmem:[%s452 + $0x20] sm:$0xf]
        %v515 = vld [vmem:[%s452 + $0x24] sm:$0xf]
        %v516 = vld [vmem:[%s452 + $0x28] sm:$0xf]
        %v517 = vld [vmem:[%s452 + $0x2c] sm:$0xf]
        %v518 = vld [vmem:[%s452 + $0x30] sm:$0xf]
        %v519 = vld [vmem:[%s452 + $0x34] sm:$0xf]
        %v520 = vld [vmem:[%s452 + $0x38] sm:$0xf]
        %v521 = vld [vmem:[%s452 + $0x3c] sm:$0xf]
        %v538 = vunpack.c.l.b16 %v506
        %v539 = vunpack.c.l.b16 %v507
        %v540 = vunpack.c.l.b16 %v508
        %v541 = vunpack.c.l.b16 %v509
        %v542 = vunpack.c.l.b16 %v510
        %v543 = vunpack.c.l.b16 %v511
        %v544 = vunpack.c.l.b16 %v512
        %v545 = vunpack.c.l.b16 %v513
        %v546 = vunpack.c.l.b16 %v514
        %v547 = vunpack.c.l.b16 %v515
        %v548 = vunpack.c.l.b16 %v516
        %v549 = vunpack.c.l.b16 %v517
        %v550 = vunpack.c.l.b16 %v518
        %v551 = vunpack.c.l.b16 %v519
        %v552 = vunpack.c.l.b16 %v520
        %v553 = vunpack.c.l.b16 %v521
        %v554 = vpack.c.b16 %v539, %v538
        %v555 = vpack.c.b16 %v541, %v540
        %v556 = vpack.c.b16 %v543, %v542
        %v557 = vpack.c.b16 %v545, %v544
        %v558 = vpack.c.b16 %v547, %v546
        %v559 = vpack.c.b16 %v549, %v548
        %v560 = vpack.c.b16 %v551, %v550
        %v561 = vpack.c.b16 %v553, %v552
        %570 = vmatpush.bf16.msra.mxu0 %v561
        %571 = vmatpush.bf16.msra.mxu0 %v560
        %572 = vmatpush.bf16.msra.mxu0 %v559
        %573 = vmatpush.bf16.msra.mxu0 %v558
        %574 = vmatpush.bf16.msra.mxu0 %v557
        %575 = vmatpush.bf16.msra.mxu0 %v556
        %576 = vmatpush.bf16.msra.mxu0 %v555
        %577 = vmatpush.bf16.msra.mxu0 %v554
        %578 = vmatmul.bf16.gmra.mxu0 %v505
        %v579 = vpop.f32.mrf.mxu0
        %v580 = vadd.f32 0.0, %v579
        %v581 = vpop.f32.mrf.mxu0
        %582 = vdwg.mxu0
        %v584 = vrot.slane %v580, 3
        %v586 = vadd.f32 %v580, %v584
        %v587 = vmul.f32 %v586, %v586
        %v589 = vrot.slane %v587, 1
        %v591 = vadd.f32 %v587, %v589
        %v592 = vrot.slane %v587, 2
        %v594 = vadd.f32 %v591, %v592
        %v595 = vrsqrt.pop %v594
        %v596 = vmul.f32 %v595, %v594
        %v597 = vmul.f32 %v596, %v595
        %v598 = vmul.f32 0.5, %v597
        %v599 = vsub.f32 1.5, %v598
        %v600 = vmul.f32 %v595, %v599
        %v601 = vmul.f32 %v594, %v600
        %vm602 = vcmp.eq.f32.partialorder %v594, inf
        %v603 = vsel %vm602, %v594, %v601
        %vm604 = vcmp.eq.f32.partialorder %v594, 0.0
        %v605 = vand.u32 %v594, 2147483648
        %v606 = vsel %vm604, %v605, %v603
        %v607 = vld [vmem:[%s471] sm:$0xff]
        %v608 = vld [vmem:[%s471 + $0x8] sm:$0xff]
        %v609 = vld [vmem:[%s471 + $0x10] sm:$0xff]
        %v610 = vld [vmem:[%s471 + $0x18] sm:$0xff]
        %612 = vset.pattern.permute.xlu0 0
        %613 = vperm.xlu0 %612, %v607
        %v614 = vpop.permute.xlu0 %613
        %617 = vset.pattern.permute.xlu0 0
        %618 = vperm.xlu0 %617, %v608
        %v619 = vpop.permute.xlu0 %618
        %622 = vset.pattern.permute.xlu0 0
        %623 = vperm.xlu0 %622, %v609
        %v624 = vpop.permute.xlu0 %623
        %627 = vset.pattern.permute.xlu0 0
        %628 = vperm.xlu0 %627, %v610
        %v629 = vpop.permute.xlu0 %628
        %v631 = vperm.slane %v606, 0
        %v632 = vmul.f32 %v614, %v631
        %v633 = vmul.f32 %v619, %v631
        %v634 = vmul.f32 %v624, %v631
        %v635 = vmul.f32 %v629, %v631
        %v636 = vld [vmem:[%s466] sm:$0xf]
        %v637 = vld [vmem:[%s466 + $0x4] sm:$0xf]
        %v638 = vld [vmem:[%s466 + $0x8] sm:$0xf]
        %v639 = vld [vmem:[%s466 + $0xc] sm:$0xf]
        %v640 = vunpack.c.l.bf16 %v636
        %v641 = vunpack.c.l.bf16 %v637
        %v642 = vunpack.c.l.bf16 %v638
        %v643 = vunpack.c.l.bf16 %v639
        %v644 = vadd.f32 %v632, %v640
        %v645 = vadd.f32 %v633, %v641
        %v646 = vadd.f32 %v634, %v642
        %v647 = vadd.f32 %v635, %v643
        %v648 = vld [vmem:[%s476] sm:$0xff]
        %v649 = vld [vmem:[%s476 + $0x8] sm:$0xff]
        %v650 = vld [vmem:[%s476 + $0x10] sm:$0xff]
        %v651 = vld [vmem:[%s476 + $0x18] sm:$0xff]
        %653 = vset.pattern.permute.xlu0 0
        %654 = vperm.xlu0 %653, %v648
        %v655 = vpop.permute.xlu0 %654
        %658 = vset.pattern.permute.xlu0 0
        %659 = vperm.xlu0 %658, %v649
        %v660 = vpop.permute.xlu0 %659
        %663 = vset.pattern.permute.xlu0 0
        %664 = vperm.xlu0 %663, %v650
        %v665 = vpop.permute.xlu0 %664
        %668 = vset.pattern.permute.xlu0 0
        %669 = vperm.xlu0 %668, %v651
        %v670 = vpop.permute.xlu0 %669
        %v672 = vadd.f32 %v644, %v655
        %v673 = vadd.f32 %v645, %v660
        %v674 = vadd.f32 %v646, %v665
        %v675 = vadd.f32 %v647, %v670
        %v676 = vsub.f32 0.0, %v672
        %v677 = vsub.f32 0.0, %v673
        %v678 = vsub.f32 0.0, %v674
        %v679 = vsub.f32 0.0, %v675
        %v680 = vmul.f32 %v676, 1.442695
        %v681 = vpow.pop %v680
        %v682 = vmul.f32 %v677, 1.442695
        %v683 = vpow.pop %v682
        %v684 = vmul.f32 %v678, 1.442695
        %v685 = vpow.pop %v684
        %v686 = vmul.f32 %v679, 1.442695
        %v687 = vpow.pop %v686
        %v688 = vadd.f32 %v681, 1.0
        %v689 = vadd.f32 %v683, 1.0
        %v690 = vadd.f32 %v685, 1.0
        %v691 = vadd.f32 %v687, 1.0
        %v692 = vrcp.pop %v688
        %v693 = vrcp.pop %v689
        %v694 = vrcp.pop %v690
        %v695 = vrcp.pop %v691
        %v696 = vmul.f32 %v672, %v692
        %v697 = vmul.f32 %v673, %v693
        %v698 = vmul.f32 %v674, %v694
        %v699 = vmul.f32 %v675, %v695
        %v700 = vld [vmem:[%s481] sm:$0xff]
        %v701 = vld [vmem:[%s481 + $0x8] sm:$0xff]
        %v702 = vld [vmem:[%s481 + $0x10] sm:$0xff]
        %v703 = vld [vmem:[%s481 + $0x18] sm:$0xff]
        %705 = vset.pattern.permute.xlu0 0
        %706 = vperm.xlu0 %705, %v700
        %v707 = vpop.permute.xlu0 %706
        %710 = vset.pattern.permute.xlu0 0
        %711 = vperm.xlu0 %710, %v701
        %v712 = vpop.permute.xlu0 %711
        %715 = vset.pattern.permute.xlu0 0
        %716 = vperm.xlu0 %715, %v702
        %v717 = vpop.permute.xlu0 %716
        %720 = vset.pattern.permute.xlu0 0
        %721 = vperm.xlu0 %720, %v703
        %v722 = vpop.permute.xlu0 %721
        %v724 = vmul.f32 %v696, %v707
        %v725 = vmul.f32 %v697, %v712
        %v726 = vmul.f32 %v698, %v717
        %v727 = vmul.f32 %v699, %v722
        %v728 = vadd.f32 %v724, %v725
        %v729 = vadd.f32 %v728, %v726
        %v730 = vadd.f32 %v729, %v727
        %v731 = vrot.slane %v730, 4
        %v732 = vadd.f32 %v730, %v731
        %v733 = vrot.slane %v732, 2
        %v734 = vadd.f32 %v732, %v733
        %v735 = vrot.slane %v734, 1
        %v736 = vadd.f32 %v734, %v735
        %v737 = vtanh.pop %v736
        %v738 = vmul.f32 %v586, %v737
        %v739 = vpack.c.bf16 %v738, %v738
        %v740 = vunpack.c.l.bf16 %v739
        %v741 = vsub.f32 %v738, %v740
        %v743 = vrot.slane %v741, 5
        %v745 = vsel %vm501, %v740, %v743
        %v746 = vsel %vm503, %v745, 0.0
        %v747 = vpack.c.bf16 %v746, %v746
        %v748 = vld [vmem:[%s457] sm:$0xf]
        %v749 = vld [vmem:[%s457 + $0x4] sm:$0xf]
        %v750 = vld [vmem:[%s457 + $0x8] sm:$0xf]
        %v751 = vld [vmem:[%s457 + $0xc] sm:$0xf]
        %v752 = vld [vmem:[%s457 + $0x10] sm:$0xf]
        %v753 = vld [vmem:[%s457 + $0x14] sm:$0xf]
        %v754 = vld [vmem:[%s457 + $0x18] sm:$0xf]
        %v755 = vld [vmem:[%s457 + $0x1c] sm:$0xf]
        %v756 = vld [vmem:[%s457 + $0x20] sm:$0xf]
        %v757 = vld [vmem:[%s457 + $0x24] sm:$0xf]
        %v758 = vld [vmem:[%s457 + $0x28] sm:$0xf]
        %v759 = vld [vmem:[%s457 + $0x2c] sm:$0xf]
        %v760 = vld [vmem:[%s457 + $0x30] sm:$0xf]
        %v761 = vld [vmem:[%s457 + $0x34] sm:$0xf]
        %v762 = vld [vmem:[%s457 + $0x38] sm:$0xf]
        %v763 = vld [vmem:[%s457 + $0x3c] sm:$0xf]
        %v780 = vunpack.c.l.b16 %v748
        %v781 = vunpack.c.l.b16 %v749
        %v782 = vunpack.c.l.b16 %v750
        %v783 = vunpack.c.l.b16 %v751
        %v784 = vunpack.c.l.b16 %v752
        %v785 = vunpack.c.l.b16 %v753
        %v786 = vunpack.c.l.b16 %v754
        %v787 = vunpack.c.l.b16 %v755
        %v788 = vunpack.c.l.b16 %v756
        %v789 = vunpack.c.l.b16 %v757
        %v790 = vunpack.c.l.b16 %v758
        %v791 = vunpack.c.l.b16 %v759
        %v792 = vunpack.c.l.b16 %v760
        %v793 = vunpack.c.l.b16 %v761
        %v794 = vunpack.c.l.b16 %v762
        %v795 = vunpack.c.l.b16 %v763
        %v796 = vpack.c.b16 %v781, %v780
        %v797 = vpack.c.b16 %v783, %v782
        %v798 = vpack.c.b16 %v785, %v784
        %v799 = vpack.c.b16 %v787, %v786
        %v800 = vpack.c.b16 %v789, %v788
        %v801 = vpack.c.b16 %v791, %v790
        %v802 = vpack.c.b16 %v793, %v792
        %v803 = vpack.c.b16 %v795, %v794
        %812 = vmatpush.bf16.msra.mxu0 %v803
        %813 = vmatpush.bf16.msra.mxu0 %v802
        %814 = vmatpush.bf16.msra.mxu0 %v801
        %815 = vmatpush.bf16.msra.mxu0 %v800
        %816 = vmatpush.bf16.msra.mxu0 %v799
        %817 = vmatpush.bf16.msra.mxu0 %v798
        %818 = vmatpush.bf16.msra.mxu0 %v797
        %819 = vmatpush.bf16.msra.mxu0 %v796
        %820 = vmatmul.bf16.gmra.mxu0 %v747
        %v821 = vpop.f32.mrf.mxu0
        %v822 = vadd.f32 0.0, %v821
        %v823 = vpop.f32.mrf.mxu0
        %824 = vdwg.mxu0
        %v825 = vld [vmem:[#allocation3] sm:$0x7]
        %v827 = vrot.slane %v822, 3
        %v829 = vadd.f32 %v822, %v827
        %v830 = vadd.f32 %v825, %v829
        %831 = vst [vmem:[#allocation3] sm:$0x7] %v830
        // Predicated region
        $region69: #{tpu_custom_call.1} parent=59 // pred_check
          %p832 = pneg %p483
        $region70: #{tpu_custom_call.1} parent=59 // pred_check_branch
          %834 = sbr.rel (%p832) target = $region72
        $region71: #{tpu_custom_call.1} parent=59 // pred_region
          %v835 = vld [vmem:[#allocation2] sm:$0x7]
          %v836 = vld [vmem:[#allocation3] sm:$0x7]
          %v837 = vld [vmem:[%s2] sm:$0x1]
          %v839 = vperm.slane %v837, 0
          %v841 = vmul.f32 %v836, %v839
          %v842 = vadd.f32 %v835, %v841
          %v843 = vld [vmem:[%s1] sm:$0x7]
          %v844 = vld [vmem:[%s448] sm:$0x1]
          %v846 = vperm.slane %v844, 0
          %v848 = vmul.f32 %v843, %v846
          %v849 = vadd.f32 %v842, %v848
          %850 = vst [vmem:[#allocation2] sm:$0x7] %v849
          %851 = vst [vmem:[#allocation4] sm:$0x7] %v849
        $region72: #{tpu_custom_call.1} parent=59 // pred_fallthru
          _
        // Predicated region
        $region73: #{tpu_custom_call.1} parent=59 // pred_check
          %p852 = pneg %p294
        $region74: #{tpu_custom_call.1} parent=59 // pred_check_branch
          %854 = sbr.rel (%p852) target = $region76
        $region75: #{tpu_custom_call.1} parent=59 // pred_region
          %856 = vsyncadd [#allocation5], 0
          %s858 = sshll.u32 [#allocation4], 4
          %s859 = int_to_ptr.vmem [resolvable:$true] %s858
          %s860 = sshll.u32 %s10, 4
          %s861 = int_to_ptr.hbm [resolvable:$true] %s860
          %863 = dma.vmem_to_hbm [thread:$0]  %s859, 64, %s861, [#allocation5]
        $region76: #{tpu_custom_call.1} parent=59 // pred_fallthru
          _
        // Predicated region
        $region77: #{tpu_custom_call.1} parent=59 // pred_check
          %p864 = pneg %p294
        $region78: #{tpu_custom_call.1} parent=59 // pred_check_branch
          %866 = sbr.rel (%p864) target = $region80
        $region79: #{tpu_custom_call.1} parent=59 // pred_region
          %868 = dma.done [#allocation5], 64
        $region80: #{tpu_custom_call.1} parent=59 // pred_fallthru
          _
      $region60: #{tpu_custom_call.1} parent=5 // pred_fallthru
        _
      %p869 = scmp.le.s32.totalorder 2, %s17
      // Predicated region
      $region81: #{tpu_custom_call.1} parent=5 // pred_check
        %p870 = pneg %p869
      $region82: #{tpu_custom_call.1} parent=5 // pred_check_branch
        %872 = sbr.rel (%p870) target = $region84
      $region83: #{tpu_custom_call.1} parent=5 // pred_region
        %s873 = ssub.s32 %s17, 2
      $region84: #{tpu_custom_call.1} parent=5 // pred_fallthru
        _
    $region6: #{tpu_custom_call.1} parent=1 // loop_footer
      %s21 = sadd.s32 1, %s17
    $region7: #{tpu_custom_call.1} parent=1 // loop_footer_branch
      %16 = sbr.rel target = $region3
    $region8: #{tpu_custom_call.1} parent=1 // loop_exit
      _
    %874 = vsyncpa [#allocation5], 1
    %s875 = scalar_lea.sflag [#allocation5], 1
    %876 = vsyncpa %s875, 1

</llo_original>
